<compile_context>
chip_gen: v7x
topology: tpu7x:2x2x1
jax: 0.10.0
libtpu: 0.0.40
codegen_flags: <defaults>
</compile_context>

<pallas_src>
import functools

import numpy as np
import jax
import jax.numpy as jnp
from jax.experimental import pallas as pl
from jax.experimental.pallas import tpu as pltpu

_BM = 128            # M tile (keep 128: saturates v5e MXU, N here is small)
_BK = 512            # K tile when K cannot stay resident (v7x 32 MiB scoped VMEM)
_BK_RESIDENT = 1024  # keep the whole K dimension resident below this

# Scaled-down channel configuration (synthetic small-shape run).
ENC_CH = (8, 16, 32, 64)   # stand-ins for ResNet stage widths
ASPP_CH = 32               # stand-in for 256
SKIP_CH = 8                # stand-in for 48
ASPP_RATES = (6, 12, 18)

_BN_EPS = 1e-5
# eval-mode BatchNorm (gamma=1, beta=0, mean=0, var=1) folded into conv weights.
_BN_SCALE = 1.0 / np.sqrt(1.0 + _BN_EPS)


def _round_up(x, m):
    return (x + m - 1) // m * m


# ---------------------------------------------------------------------------
# Pallas kernel: bf16 (M,K)@(K,N) on the MXU, f32 accumulate, fused bias+ReLU.
# Grid = (M tiles, K tiles); K axis reduces into a VMEM f32 accumulator.
# ---------------------------------------------------------------------------
def _mm_bias_act_kernel(x_ref, w_ref, b_ref, o_ref, acc_ref, *, act):
    k = pl.program_id(1)

    @pl.when(k == 0)
    def _():
        acc_ref[...] = jnp.zeros_like(acc_ref)

    acc_ref[...] += jnp.dot(x_ref[...], w_ref[...],
                            preferred_element_type=jnp.float32)

    @pl.when(k == pl.num_programs(1) - 1)
    def _():
        out = acc_ref[...] + b_ref[...]
        if act == "relu":
            out = jnp.maximum(out, 0.0)
        o_ref[...] = out.astype(o_ref.dtype)


def matmul_bias_act(x, w, b, act="linear", out_dtype=jnp.float32):
    """(M,Kx)@(Kw,N) + b with optional fused ReLU on the MXU.

    Kx may exceed Kw (callers may pre-pad K); the extra x columns must be zero.
    """
    M, Kx = x.shape
    Kw, N = w.shape
    assert Kx >= Kw

    x = x.astype(jnp.bfloat16)
    w = w.astype(jnp.bfloat16)
    b = b.astype(jnp.float32)

    Kp = _round_up(Kx, 128)
    if Kp <= _BK_RESIDENT:
        bk = Kp
    else:
        Kp = _round_up(Kx, _BK)
        bk = _BK
    Np = _round_up(N, 128)

    if Kp != Kx:
        x = jnp.concatenate([x, jnp.zeros((M, Kp - Kx), x.dtype)], axis=1)
    if (Kp, Np) != (Kw, N):
        w = jnp.pad(w, ((0, Kp - Kw), (0, Np - N)))  # tiny, weights only
    bp = b.reshape(1, N)
    if Np != N:
        bp = jnp.pad(bp, ((0, 0), (0, Np - N)))

    mt = pl.cdiv(M, _BM)   # partial last M block is fine: OOB rows never written back
    nk = Kp // bk

    out = pl.pallas_call(
        functools.partial(_mm_bias_act_kernel, act=act),
        out_shape=jax.ShapeDtypeStruct((M, Np), out_dtype),
        grid=(mt, nk),
        in_specs=[
            pl.BlockSpec((_BM, bk), lambda i, k: (i, k)),
            pl.BlockSpec((bk, Np), lambda i, k: (k, 0)),
            pl.BlockSpec((1, Np), lambda i, k: (0, 0)),
        ],
        out_specs=pl.BlockSpec((_BM, Np), lambda i, k: (i, 0)),
        scratch_shapes=[pltpu.VMEM((_BM, Np), jnp.float32)],
        compiler_params=pltpu.CompilerParams(
            dimension_semantics=("parallel", "arbitrary")),
    )(x, w, bp)
    return out if Np == N else out[:, :N]


# ---------------------------------------------------------------------------
# Conv / bilinear / pooling glue
# ---------------------------------------------------------------------------
def conv2d(x, w, b, *, stride=1, padding=0, dilation=1, act="linear",
           out_dtype=jnp.bfloat16):
    """NHWC conv via im2col (XLA glue, bf16) + Pallas MXU matmul. w is HWIO."""
    N, H, W, C = x.shape
    kh, kw, cin, cout = w.shape
    assert cin == C
    x = x.astype(jnp.bfloat16)
    xp = jnp.pad(x, ((0, 0), (padding, padding), (padding, padding), (0, 0))) \
        if padding else x
    Ho = (H + 2 * padding - dilation * (kh - 1) - 1) // stride + 1
    Wo = (W + 2 * padding - dilation * (kw - 1) - 1) // stride + 1
    K = kh * kw * cin
    Kp = _round_up(K, 128)
    if Kp > _BK_RESIDENT:
        Kp = _round_up(K, _BK)
    # TODO(synk): at real ResNet widths, move the kh*kw tap loop into the kernel
    # (tap grid axis + the existing VMEM accumulator) to avoid materializing the
    # 9x im2col buffer in HBM.
    cols = []
    for i in range(kh):
        for j in range(kw):
            hi, wi = i * dilation, j * dilation
            cols.append(xp[:, hi:hi + (Ho - 1) * stride + 1:stride,
                           wi:wi + (Wo - 1) * stride + 1:stride, :])
    if Kp != K:  # fold the K zero-pad into the single im2col materialization
        cols.append(jnp.zeros((N, Ho, Wo, Kp - K), jnp.bfloat16))
    patches = cols[0] if len(cols) == 1 else jnp.concatenate(cols, axis=-1)
    out = matmul_bias_act(patches.reshape(N * Ho * Wo, Kp),
                          w.reshape(K, cout), b, act=act, out_dtype=out_dtype)
    return out.reshape(N, Ho, Wo, cout)


def _interp_taps(in_size, out_size):
    """Taps/weights matching F.interpolate(mode='bilinear', align_corners=False)."""
    scale = in_size / out_size
    pos = (np.arange(out_size, dtype=np.float64) + 0.5) * scale - 0.5
    pos = np.clip(pos, 0.0, in_size - 1)
    i0 = np.minimum(np.floor(pos).astype(np.int32), in_size - 1)
    i1 = np.minimum(i0 + 1, in_size - 1)
    lam = (pos - i0).astype(np.float32)
    return i0, i1, lam


def bilinear_resize(x, out_h, out_w):
    """Separable bilinear resize as VPU/XLA lerps (static gathers). x: NHWC."""
    N, H, W, C = x.shape
    if H != out_h:
        i0, i1, lam = _interp_taps(H, out_h)
        lam = jnp.asarray(lam)[None, :, None, None]
        x = x[:, i0, :, :] * (1.0 - lam) + x[:, i1, :, :] * lam
    if W != out_w:
        i0, i1, lam = _interp_taps(W, out_w)
        lam = jnp.asarray(lam)[None, None, :, None]
        x = x[:, :, i0, :] * (1.0 - lam) + x[:, :, i1, :] * lam
    return x


# ---------------------------------------------------------------------------
# Parameters (deterministic synthetic init; eval-mode BN folded) + branch fusion
# ---------------------------------------------------------------------------
def _conv_bn_params(key, kh, kw, cin, cout):
    w = jax.random.normal(key, (kh, kw, cin, cout), jnp.float32) / np.sqrt(kh * kw * cin)
    return {"w": w * _BN_SCALE, "b": jnp.zeros((cout,), jnp.float32)}


def _conv_params(key, kh, kw, cin, cout):
    kw_, kb_ = jax.random.split(key)
    w = jax.random.normal(kw_, (kh, kw, cin, cout), jnp.float32) / np.sqrt(kh * kw * cin)
    b = jax.random.normal(kb_, (cout,), jnp.float32) * 0.01
    return {"w": w, "b": b}


def _fuse_cout(pa, pb):
    """Two convs with identical inputs -> one conv with concatenated output channels."""
    return {"w": jnp.concatenate([pa["w"], pb["w"]], axis=-1),
            "b": jnp.concatenate([pa["b"], pb["b"]], axis=0)}


def _fuse_blockdiag(pa, pb, chunks):
    """Two convs with task-separated inputs -> one block-structured conv.

    chunks: list of (ca_i, cb_i) per input chunk; the fused input layout per chunk
    is [task_a channels | task_b channels].
    """
    kh, kw = pa["w"].shape[:2]
    na, nb = pa["w"].shape[-1], pb["w"].shape[-1]
    cin_f = sum(ca + cb for ca, cb in chunks)
    w = jnp.zeros((kh, kw, cin_f, na + nb), jnp.float32)
    off_f = off_a = off_b = 0
    for ca, cb in chunks:
        w = w.at[:, :, off_f:off_f + ca, :na].set(pa["w"][:, :, off_a:off_a + ca, :])
        w = w.at[:, :, off_f + ca:off_f + ca + cb, na:].set(
            pb["w"][:, :, off_b:off_b + cb, :])
        off_f += ca + cb
        off_a += ca
        off_b += cb
    return {"w": w, "b": jnp.concatenate([pa["b"], pb["b"]], axis=0)}


def init_model_params(key, in_ch, outputs_desc):
    keys = iter(jax.random.split(key, 64))
    ch_out = sum(outputs_desc.values())

    enc = {
        "c1": _conv_bn_params(next(keys), 3, 3, in_ch, ENC_CH[0]),
        "c2": _conv_bn_params(next(keys), 3, 3, ENC_CH[0], ENC_CH[1]),
        "c3": _conv_bn_params(next(keys), 3, 3, ENC_CH[1], ENC_CH[2]),
        "c4": _conv_bn_params(next(keys), 3, 3, ENC_CH[2], ENC_CH[3]),
    }

    def aspp(ch_in):
        return {
            "b1": _conv_bn_params(next(keys), 1, 1, ch_in, ASPP_CH),
            "b2": _conv_bn_params(next(keys), 3, 3, ch_in, ASPP_CH),
            "b3": _conv_bn_params(next(keys), 3, 3, ch_in, ASPP_CH),
            "b4": _conv_bn_params(next(keys), 3, 3, ch_in, ASPP_CH),
            "pool": _conv_bn_params(next(keys), 1, 1, ch_in, ASPP_CH),
            "proj": _conv_bn_params(next(keys), 1, 1, 5 * ASPP_CH, ASPP_CH),
        }

    def decoder(n_out):
        return {
            "skip": _conv_bn_params(next(keys), 1, 1, ENC_CH[1], SKIP_CH),
            "fuse": _conv_bn_params(next(keys), 3, 3, ASPP_CH + SKIP_CH, ASPP_CH),
            "head": _conv_params(next(keys), 1, 1, ASPP_CH, n_out),
        }

    # Two independent branches (as in the PyTorch module) ...
    aspp_s, aspp_d = aspp(ENC_CH[3]), aspp(ENC_CH[3])
    dec_s, dec_d = decoder(ch_out - 1), decoder(1)

    # ... fused at init time so each layer of the forward pass is a single matmul
    # over 2x the output channels (channel layout per layer: [semseg | depth]).
    aspp_f = {
        "b1": _fuse_cout(aspp_s["b1"], aspp_d["b1"]),
        "b2": _fuse_cout(aspp_s["b2"], aspp_d["b2"]),
        "b3": _fuse_cout(aspp_s["b3"], aspp_d["b3"]),
        "b4": _fuse_cout(aspp_s["b4"], aspp_d["b4"]),
        "pool": _fuse_cout(aspp_s["pool"], aspp_d["pool"]),
        "proj": _fuse_blockdiag(aspp_s["proj"], aspp_d["proj"],
                                [(ASPP_CH, ASPP_CH)] * 5),
    }
    dec_f = {
        "skip": _fuse_cout(dec_s["skip"], dec_d["skip"]),
        "fuse": _fuse_blockdiag(dec_s["fuse"], dec_d["fuse"],
                                [(ASPP_CH, ASPP_CH), (SKIP_CH, SKIP_CH)]),
        "head": _fuse_blockdiag(dec_s["head"], dec_d["head"],
                                [(ASPP_CH, ASPP_CH)]),
    }
    return {"encoder": enc, "aspp": aspp_f, "decoder": dec_f}


# ---------------------------------------------------------------------------
# Forward pass (mirrors ModelDeepLabV3PlusBranched.forward)
# ---------------------------------------------------------------------------
def encoder_forward(p, x):
    # TODO(synk): small synthetic conv stack stands in for the pretrained ResNet
    # backbone; it honours the same contract (dict {downscale_factor: feature},
    # output stride 16 as with replace_stride_with_dilation on the last stage).
    feats = {}
    h = conv2d(x, p["c1"]["w"], p["c1"]["b"], stride=2, padding=1, act="relu")
    feats[2] = h
    h = conv2d(h, p["c2"]["w"], p["c2"]["b"], stride=2, padding=1, act="relu")
    feats[4] = h
    h = conv2d(h, p["c3"]["w"], p["c3"]["b"], stride=2, padding=1, act="relu")
    feats[8] = h
    h = conv2d(h, p["c4"]["w"], p["c4"]["b"], stride=2, padding=1, act="relu")
    feats[16] = h
    return feats


def aspp_forward(p, x):
    """Fused (semseg|depth) ASPP: each layer is one conv with 2*ASPP_CH outputs."""
    b1 = conv2d(x, p["b1"]["w"], p["b1"]["b"], act="relu")
    b2 = conv2d(x, p["b2"]["w"], p["b2"]["b"],
                padding=ASPP_RATES[0], dilation=ASPP_RATES[0], act="relu")
    b3 = conv2d(x, p["b3"]["w"], p["b3"]["b"],
                padding=ASPP_RATES[1], dilation=ASPP_RATES[1], act="relu")
    b4 = conv2d(x, p["b4"]["w"], p["b4"]["b"],
                padding=ASPP_RATES[2], dilation=ASPP_RATES[2], act="relu")
    pooled = jnp.mean(x, axis=(1, 2), keepdims=True)          # VPU/XLA reduction
    pooled = conv2d(pooled, p["pool"]["w"], p["pool"]["b"], act="relu")
    b5 = jnp.broadcast_to(pooled, b1.shape)                    # upsample of 1x1 = const
    cat = jnp.concatenate([b1, b2, b3, b4, b5], axis=-1)
    return conv2d(cat, p["proj"]["w"], p["proj"]["b"], act="relu")


def decoder_forward(p, bottleneck, skip):
    """Fused (semseg|depth) decoder; returns fused 4x predictions [sem | depth]."""
    N, Hs, Ws, _ = skip.shape
    skip_r = conv2d(skip, p["skip"]["w"], p["skip"]["b"], act="relu")
    up = bilinear_resize(bottleneck, Hs, Ws).astype(jnp.bfloat16)
    cat = jnp.concatenate([up, skip_r], axis=-1)
    feat = conv2d(cat, p["fuse"]["w"], p["fuse"]["b"], padding=1, act="relu")
    pred = conv2d(feat, p["head"]["w"], p["head"]["b"], out_dtype=jnp.float32)
    return pred


def model_forward(params, x_nchw, outputs_desc):
    x = jnp.transpose(x_nchw, (0, 2, 3, 1))  # NCHW -> NHWC
    input_resolution = (x_nchw.shape[2], x_nchw.shape[3])

    feats = encoder_forward(params["encoder"], x)
    lowest_scale = max(feats.keys())
    features_lowest = feats[lowest_scale]

    bottleneck = aspp_forward(params["aspp"], features_lowest)          # [sem|dep] channels
    pred_4x = decoder_forward(params["decoder"], bottleneck, feats[4])  # [sem(ch_out-1)|dep(1)]
    pred_1x = bilinear_resize(pred_4x, *input_resolution)

    preds = jnp.transpose(pred_1x, (0, 3, 1, 2)).astype(jnp.float32)    # NCHW

    out = {}
    offset = 0
    for task, num_ch in outputs_desc.items():
        out[task] = preds[:, offset:offset + num_ch, :, :]
        offset += num_ch
    return out


if __name__ == "__main__":
    key = jax.random.PRNGKey(0)
    k1, k2, k3, kx, kp = jax.random.split(key, 5)

    # --- self-check of the K-tiled matmul path (nk > 1, partial M block) ---
    xt = jax.random.normal(k1, (200, 1536), jnp.float32)
    wt = jax.random.normal(k2, (1536, 96), jnp.float32) / np.sqrt(1536)
    bt = jax.random.normal(k3, (96,), jnp.float32)
    got = jax.block_until_ready(
        matmul_bias_act(xt, wt, bt, act="relu", out_dtype=jnp.float32))
    xb = np.asarray(xt.astype(jnp.bfloat16).astype(jnp.float32))
    wb = np.asarray(wt.astype(jnp.bfloat16).astype(jnp.float32))
    ref = np.maximum(xb @ wb + np.asarray(bt), 0.0)
    np.testing.assert_allclose(np.asarray(got), ref, rtol=5e-3, atol=5e-3)

    # --- full branched DeepLabV3+ forward ---
    outputs_desc = {"semseg": 5, "depth": 1}  # ch_out = 6 -> semseg ch_out-1, depth 1
    x = jax.random.normal(kx, (2, 3, 32, 32), jnp.float32)  # NCHW like PyTorch
    params = init_model_params(kp, 3, outputs_desc)

    fwd = jax.jit(functools.partial(model_forward, outputs_desc=outputs_desc))
    out = fwd(params, x)
    out = jax.tree_util.tree_map(jax.block_until_ready, out)

    assert out["semseg"].shape == (2, 5, 32, 32), out["semseg"].shape
    assert out["depth"].shape == (2, 1, 32, 32), out["depth"].shape
    assert all(bool(jnp.all(jnp.isfinite(v))) for v in out.values())
    print("KERNEL_OK")
</pallas_src>

<mosaic_0001>
module attributes {stable_mosaic.version = 11 : i64} {
  func.func @_mm_bias_act_kernel(%arg0: i32, %arg1: i32, %arg2: memref<128x512xbf16, #tpu.memory_space<vmem>>, %arg3: memref<512x128xbf16, #tpu.memory_space<vmem>>, %arg4: memref<1x128xf32, #tpu.memory_space<vmem>>, %arg5: memref<128x128xf32, #tpu.memory_space<vmem>>, %arg6: memref<128x128xf32, #tpu.memory_space<vmem>>) attributes {dimension_semantics = [#tpu.dimension_semantics<parallel>, #tpu.dimension_semantics<arbitrary>], iteration_bounds = array<i64: 2, 3>, scalar_prefetch = 0 : i64, scratch_operands = 1 : i64, tpu.core_type = #tpu.core_type<tc>, window_params = [{transform_indices = @transform_0, window_bounds = array<i64: 128, 512>}, {transform_indices = @transform_1, window_bounds = array<i64: 512, 128>}, {pipeline_mode = #tpu.pipeline_mode<synchronous>, transform_indices = @transform_2, window_bounds = array<i64: 1, 128>}, {transform_indices = @transform_3, window_bounds = array<i64: 128, 128>}]} {
    %c0_i32 = arith.constant 0 : i32
    %0 = arith.cmpi eq, %arg1, %c0_i32 : i32
    %1 = arith.extui %0 : i1 to i32
    %c0_i32_0 = arith.constant 0 : i32
    %2 = arith.cmpi ne, %1, %c0_i32_0 : i32
    scf.if %2 {
      %cst_9 = arith.constant 0.000000e+00 : f32
      %12 = vector.broadcast %cst_9 : f32 to vector<128x128xf32>
      %c0_10 = arith.constant 0 : index
      %c0_11 = arith.constant 0 : index
      %13 = vector.load %arg6[%c0_10, %c0_11] : memref<128x128xf32, #tpu.memory_space<vmem>>, vector<128x128xf32>
      tpu.vector_store %arg6[%c0_10, %c0_11], %12 {strides = array<i32>} : memref<128x128xf32, #tpu.memory_space<vmem>>, vector<128x128xf32>,
    } else {
    }
    %c0 = arith.constant 0 : index
    %c0_1 = arith.constant 0 : index
    %3 = vector.load %arg6[%c0, %c0_1] : memref<128x128xf32, #tpu.memory_space<vmem>>, vector<128x128xf32>
    %c0_2 = arith.constant 0 : index
    %c0_3 = arith.constant 0 : index
    %4 = vector.load %arg2[%c0_2, %c0_3] : memref<128x512xbf16, #tpu.memory_space<vmem>>, vector<128x512xbf16>
    %c0_4 = arith.constant 0 : index
    %c0_5 = arith.constant 0 : index
    %5 = vector.load %arg3[%c0_4, %c0_5] : memref<512x128xbf16, #tpu.memory_space<vmem>>, vector<512x128xbf16>
    %cst = arith.constant dense<0.000000e+00> : vector<128x128xf32>
    %6 = tpu.matmul %4, %5, %cst {dimension_numbers = #tpu.dot_dimension_numbers<[1], [0], [0], [1], [0, 0, 1, 1], [], []>} : vector<128x512xbf16>, vector<512x128xbf16>, vector<128x128xf32> -> vector<128x128xf32>
    %7 = arith.addf %3, %6 : vector<128x128xf32>
    %c0_6 = arith.constant 0 : index
    %c0_7 = arith.constant 0 : index
    %8 = vector.load %arg6[%c0_6, %c0_7] : memref<128x128xf32, #tpu.memory_space<vmem>>, vector<128x128xf32>
    tpu.vector_store %arg6[%c0_6, %c0_7], %7 {strides = array<i32>} : memref<128x128xf32, #tpu.memory_space<vmem>>, vector<128x128xf32>,
    %c2_i32 = arith.constant 2 : i32
    %9 = arith.cmpi eq, %arg1, %c2_i32 : i32
    %10 = arith.extui %9 : i1 to i32
    %c0_i32_8 = arith.constant 0 : i32
    %11 = arith.cmpi ne, %10, %c0_i32_8 : i32
    scf.if %11 {
      %c0_9 = arith.constant 0 : index
      %c0_10 = arith.constant 0 : index
      %12 = vector.load %arg6[%c0_9, %c0_10] : memref<128x128xf32, #tpu.memory_space<vmem>>, vector<128x128xf32>
      %c0_11 = arith.constant 0 : index
      %c0_12 = arith.constant 0 : index
      %13 = vector.load %arg4[%c0_11, %c0_12] : memref<1x128xf32, #tpu.memory_space<vmem>>, vector<1x128xf32>
      %14 = vector.broadcast %13 : vector<1x128xf32> to vector<128x128xf32>
      %15 = arith.addf %12, %14 : vector<128x128xf32>
      %cst_13 = arith.constant 0.000000e+00 : f32
      %16 = vector.broadcast %cst_13 : f32 to vector<128x128xf32>
      %17 = arith.maximumf %15, %16 : vector<128x128xf32>
      %c0_14 = arith.constant 0 : index
      %c0_15 = arith.constant 0 : index
      %18 = vector.load %arg5[%c0_14, %c0_15] : memref<128x128xf32, #tpu.memory_space<vmem>>, vector<128x128xf32>
      tpu.vector_store %arg5[%c0_14, %c0_15], %17 {strides = array<i32>} : memref<128x128xf32, #tpu.memory_space<vmem>>, vector<128x128xf32>,
    } else {
    }
    return
  }
  func.func @transform_0(%arg0: i32, %arg1: i32) -> (i32, i32) {
    %c0_i32 = arith.constant 0 : i32
    return %arg0, %arg1 : i32, i32
  }
  func.func @transform_1(%arg0: i32, %arg1: i32) -> (i32, i32) {
    %c0_i32 = arith.constant 0 : i32
    %c0_i32_0 = arith.constant 0 : i32
    return %arg1, %c0_i32 : i32, i32
  }
  func.func @transform_2(%arg0: i32, %arg1: i32) -> (i32, i32) {
    %c0_i32 = arith.constant 0 : i32
    %c0_i32_0 = arith.constant 0 : i32
    %c0_i32_1 = arith.constant 0 : i32
    return %c0_i32, %c0_i32_0 : i32, i32
  }
  func.func @transform_3(%arg0: i32, %arg1: i32) -> (i32, i32) {
    %c0_i32 = arith.constant 0 : i32
    %c0_i32_0 = arith.constant 0 : i32
    return %arg0, %c0_i32 : i32, i32
  }
}

</mosaic_0001>

<llo_original>
// kernel: tpu_custom_call.1
$region0: #{tpu_custom_call.1}
  #allocation0 [shape = 'u32[]', space=smem, size = 0x4, offset = 0x4, fixed_abs, tag = 'smem constant byte address 0x4 - core index']
  #allocation1 [shape = 'u32[144,128]{1,0:T(1,128)}', space=vmem, size = 0x12000, scoped, tag = 'internal scratch']
  #allocation2 [shape = 'f32[128,128]{1,0:T(8,128)}', space=vmem, size = 0x10000, scoped, tag = 'scratch operand']
  %s0 = inlined_call_operand.hbm [shape: bf16[200,1536], index: 0, kind: input, shape index: {}]
  %s1 = inlined_call_operand.hbm [shape: bf16[1536,128], index: 1, kind: input, shape index: {}]
  %s2 = inlined_call_operand.vmem [shape: f32[1,128], index: 2, kind: input, shape index: {}]
  %s3 = inlined_call_operand.hbm [shape: f32[200,128], index: 3, kind: output, shape index: {}]
  %s4 = sld [smem:[#allocation0]]
  $region61: #{tpu_custom_call.1} parent=0
    _
  %s6 = ssub.s32 1, %s4
  %s7 = scalar_select 0, %s6, %s4
  $region1: #{tpu_custom_call.1} parent=0
    #allocation3 [shape = 'u8[262144]{0}', space=vmem, size = 0x40000, scoped, tag = 'input window, operand 0']
    #allocation4 [shape = 's32[2]{0}', space=sflag, size = 0x8, scoped, tag = 'scoped memory for tpu_custom_call.1']
    #allocation5 [shape = 's32[2]{0}', space=sflag, size = 0x8, scoped, tag = 'scoped memory for tpu_custom_call.1']
    #allocation6 [shape = 'u8[262144]{0}', space=vmem, size = 0x40000, scoped, tag = 'input window, operand 1']
    #allocation7 [shape = 's32[2]{0}', space=sflag, size = 0x8, scoped, tag = 'scoped memory for tpu_custom_call.1']
    #allocation8 [shape = 'u8[131072]{0}', space=vmem, size = 0x20000, scoped, tag = 'output window, operand 0']
    %8 = vsyncpa [#allocation4], 0
    %s9 = scalar_lea.sflag [#allocation4], 1
    %10 = vsyncpa %s9, 0
    %11 = vsyncpa [#allocation7], 0
    %s12 = scalar_lea.sflag [#allocation7], 1
    %13 = vsyncpa %s12, 0
    %14 = vsyncpa [#allocation5], 0
    %s15 = scalar_lea.sflag [#allocation5], 1
    %16 = vsyncpa %s15, 0
    loop: start=0, step=1, limit=8
    $region2: #{tpu_custom_call.1} parent=1 // loop_pre_header
      _
    $region3: #{tpu_custom_call.1} parent=1 // loop_header
      %s18 = sphi 0, %s22
      %p19 = scmp.ge.s32.totalorder %s18, 8
      %s25 = sphi 0, %s37
      %s26 = sphi 0, %s33
      %s27 = sphi 0, %s25
      %s28 = sphi 0, %s26
      %s29 = sphi 0, %s27
      %s30 = sphi 0, %s28
      %s42 = sphi 0, %s44
      %s45 = sphi 0, %s42
      %s46 = sphi 0, %s45
      %s62 = sphi 0, %s46
      %s68 = sphi 0, %s70
      %s71 = sphi 0, %s68
      %s72 = sphi 0, %s71
      %s88 = sphi 0, %s72
      %s92 = sphi 0, %s92
      %s94 = sphi 0, %s92
      %s95 = sphi 0, %s94
      %s109 = sphi 0, %s95
      %s115 = sphi 0, %s117
      %s118 = sphi 0, %s115
      %s119 = sphi 0, %s118
      %s135 = sphi 0, %s119
    $region4: #{tpu_custom_call.1} parent=1 // loop_header_branch
      %21 = sbr.rel (%p19) target = $region8
    $region5: #{tpu_custom_call.1} parent=1 // loop_body
      %s23 = ssub.s32 %s18, 1
      %s24 = ssub.s32 %s18, 2
      %s31 = sadd.s32 1, %s26
      %p32 = scmp.ge.s32.totalorder %s31, 3
      %s33 = scalar_select %p32, 0, %s31
      %s34 = sadd.s32 1, %s25
      %s35 = scalar_select %p32, %s34, %s25
      %p36 = scmp.ge.s32.totalorder %s35, 2
      %s37 = scalar_select %p36, 0, %s35
      %s38 = ssub.s32 %s25, %s37
      %s39 = ssub.s32 %s26, %s33
      %s40 = sor.u32 %s38, %s39
      %p41 = scmp.eq.s32.totalorder %s40, 0
      %s43 = sadd.s32 %s42, 1
      %s44 = scalar_select %p41, %s42, %s43
      %p47 = pneg %p41
      %p48 = scmp.eq.s32.totalorder %s18, 5
      %p49 = por %p47, %p48
      %p50 = scmp.ne.s32.totalorder %s42, %s45
      %p51 = scmp.eq.s32.totalorder %s18, 0
      %p52 = por %p50, %p51
      %p53 = scmp.ne.s32.totalorder %s42, %s45
      %p54 = scmp.eq.s32.totalorder %s23, 5
      %p55 = por %p53, %p54
      %p56 = scmp.ne.s32.totalorder %s45, %s46
      %p57 = scmp.eq.s32.totalorder %s23, 0
      %p58 = por %p56, %p57
      %p59 = scmp.ne.s32.totalorder %s45, %s46
      %p60 = scmp.eq.s32.totalorder %s24, 5
      %p61 = por %p59, %p60
      %p63 = scmp.ne.s32.totalorder %s46, %s62
      %p64 = scmp.eq.s32.totalorder %s24, 0
      %p65 = por %p63, %p64
      %s66 = ssub.s32 %s26, %s33
      %p67 = scmp.eq.s32.totalorder %s66, 0
      %s69 = sadd.s32 %s68, 1
      %s70 = scalar_select %p67, %s68, %s69
      %p73 = pneg %p67
      %p74 = scmp.eq.s32.totalorder %s18, 5
      %p75 = por %p73, %p74
      %p76 = scmp.ne.s32.totalorder %s68, %s71
      %p77 = scmp.eq.s32.totalorder %s18, 0
      %p78 = por %p76, %p77
      %p79 = scmp.ne.s32.totalorder %s68, %s71
      %p80 = scmp.eq.s32.totalorder %s23, 5
      %p81 = por %p79, %p80
      %p82 = scmp.ne.s32.totalorder %s71, %s72
      %p83 = scmp.eq.s32.totalorder %s23, 0
      %p84 = por %p82, %p83
      %p85 = scmp.ne.s32.totalorder %s71, %s72
      %p86 = scmp.eq.s32.totalorder %s24, 5
      %p87 = por %p85, %p86
      %p89 = scmp.ne.s32.totalorder %s72, %s88
      %p90 = scmp.eq.s32.totalorder %s24, 0
      %p91 = por %p89, %p90
      %s93 = sadd.s32 %s92, 1
      %p96 = scmp.eq.s32.totalorder %s18, 5
      %p97 = scmp.ne.s32.totalorder %s92, %s94
      %p98 = scmp.eq.s32.totalorder %s18, 0
      %p99 = por %p97, %p98
      %p100 = scmp.ne.s32.totalorder %s92, %s94
      %p101 = scmp.eq.s32.totalorder %s23, 5
      %p102 = por %p100, %p101
      %p103 = scmp.ne.s32.totalorder %s94, %s95
      %p104 = scmp.eq.s32.totalorder %s23, 0
      %p105 = por %p103, %p104
      %p106 = scmp.ne.s32.totalorder %s94, %s95
      %p107 = scmp.eq.s32.totalorder %s24, 5
      %p108 = por %p106, %p107
      %p110 = scmp.ne.s32.totalorder %s95, %s109
      %p111 = scmp.eq.s32.totalorder %s24, 0
      %p112 = por %p110, %p111
      %s113 = ssub.s32 %s25, %s37
      %p114 = scmp.eq.s32.totalorder %s113, 0
      %s116 = sadd.s32 %s115, 1
      %s117 = scalar_select %p114, %s115, %s116
      %p120 = pneg %p114
      %p121 = scmp.eq.s32.totalorder %s18, 5
      %p122 = por %p120, %p121
      %p123 = scmp.ne.s32.totalorder %s115, %s118
      %p124 = scmp.eq.s32.totalorder %s18, 0
      %p125 = por %p123, %p124
      %p126 = scmp.ne.s32.totalorder %s115, %s118
      %p127 = scmp.eq.s32.totalorder %s23, 5
      %p128 = por %p126, %p127
      %p129 = scmp.ne.s32.totalorder %s118, %s119
      %p130 = scmp.eq.s32.totalorder %s23, 0
      %p131 = por %p129, %p130
      %p132 = scmp.ne.s32.totalorder %s118, %s119
      %p133 = scmp.eq.s32.totalorder %s24, 5
      %p134 = por %p132, %p133
      %p136 = scmp.ne.s32.totalorder %s119, %s135
      %p137 = scmp.eq.s32.totalorder %s24, 0
      %p138 = por %p136, %p137
      %p139 = scmp.le.s32.totalorder 1, %s18
      %p140 = scmp.lt.s32.totalorder %s18, 7
      %p141 = pnand %p139, %p140
      %p142 = pneg %p141
      // Predicated region
      $region9: #{tpu_custom_call.1} parent=5 // pred_check
        _
      $region10: #{tpu_custom_call.1} parent=5 // pred_check_branch
        %144 = sbr.rel (%p141) target = $region12
      $region11: #{tpu_custom_call.1} parent=5 // pred_region
        %s145 = ssub.s32 %s18, 1
        // Predicated region
        $region13: #{tpu_custom_call.1} parent=11 // pred_check
          %p146 = pneg %p105
        $region14: #{tpu_custom_call.1} parent=11 // pred_check_branch
          %148 = sbr.rel (%p146) target = $region16
        $region15: #{tpu_custom_call.1} parent=11 // pred_region
          _
        $region16: #{tpu_custom_call.1} parent=11 // pred_fallthru
          _
      $region12: #{tpu_custom_call.1} parent=5 // pred_fallthru
        _
      %p149 = scmp.lt.s32.totalorder %s18, 6
      // Predicated region
      $region17: #{tpu_custom_call.1} parent=5 // pred_check
        %p150 = pneg %p149
      $region18: #{tpu_custom_call.1} parent=5 // pred_check_branch
        %152 = sbr.rel (%p150) target = $region20
      $region19: #{tpu_custom_call.1} parent=5 // pred_region
        // Predicated region
        $region21: #{tpu_custom_call.1} parent=19 // pred_check
          %p153 = pneg %p52
        $region22: #{tpu_custom_call.1} parent=19 // pred_check_branch
          %155 = sbr.rel (%p153) target = $region24
        $region23: #{tpu_custom_call.1} parent=19 // pred_region
          %s156 = sand.u32 %s42, 1
          %s157 = scalar_lea.sflag [#allocation4], %s156
          %s158 = sand.u32 %s42, 1
          %s159 = smul.addr %s158, 256
          %s160 = scalar_lea.vmem [#allocation3], %s159
          %s161 = smul.u32 16, %s25
          %s162 = smul.u32 4, %s26
          %s163 = ssub.s32 25, %s161
          %p164 = scmp.lt.s32.totalorder %s163, 16
          %s165 = scalar_select %p164, %s163, 16
          %s166 = smul.u32 64, %s165
          %s167 = smul.u32 %s166, 4
          %s169 = ssub.s32 4096, %s167
          %170 = vsyncadd %s157, %s169
          %p171 = scmp.ne.s32.totalorder 0, %s167
          %s172 = smul.addr %s161, 12
          %s173 = sadd.s32 %s162, %s172
          %s174 = smul.addr %s173, 64
          %s175 = scalar_lea.hbm %s0, %s174
          %s176 = smul.u32 16, %s165
          %s177 = sshll.u32 %s160, 4
          %s178 = int_to_ptr.vmem [resolvable:$true] %s177
          %s179 = sshll.u32 %s176, 4
          %183 = dma.hbm_to_vmem [thread:$0]  (%p171), %s175, %s179, %s178, %s157, 768, 256, 16
        $region24: #{tpu_custom_call.1} parent=19 // pred_fallthru
          _
        // Predicated region
        $region25: #{tpu_custom_call.1} parent=19 // pred_check
          %p184 = pneg %p78
        $region26: #{tpu_custom_call.1} parent=19 // pred_check_branch
          %186 = sbr.rel (%p184) target = $region28
        $region27: #{tpu_custom_call.1} parent=19 // pred_region
          %s187 = sand.u32 %s68, 1
          %s188 = scalar_lea.sflag [#allocation7], %s187
          %s189 = sand.u32 %s68, 1
          %s190 = smul.addr %s189, 256
          %s191 = scalar_lea.vmem [#allocation6], %s190
          %s192 = smul.u32 64, %s26
          %s194 = ssub.s32 4096, 4096
          %195 = vsyncadd %s188, %s194
          %s196 = smul.addr %s192, 64
          %s197 = scalar_lea.hbm %s1, %s196
          %s198 = sshll.u32 %s191, 4
          %s199 = int_to_ptr.vmem [resolvable:$true] %s198
          %204 = dma.hbm_to_vmem [thread:$0]  %s197, 4096, %s199, %s188, 64, 64, 4
        $region28: #{tpu_custom_call.1} parent=19 // pred_fallthru
          _
      $region20: #{tpu_custom_call.1} parent=5 // pred_fallthru
        _
      %p205 = scmp.le.s32.totalorder 1, %s18
      %p206 = scmp.lt.s32.totalorder %s18, 7
      %p207 = pnand %p205, %p206
      %p208 = pneg %p207
      // Predicated region
      $region29: #{tpu_custom_call.1} parent=5 // pred_check
        _
      $region30: #{tpu_custom_call.1} parent=5 // pred_check_branch
        %210 = sbr.rel (%p207) target = $region32
      $region31: #{tpu_custom_call.1} parent=5 // pred_region
        %s211 = ssub.s32 %s18, 1
        %s212 = sand.u32 %s45, 1
        %s213 = scalar_lea.sflag [#allocation4], %s212
        %s214 = sand.u32 %s45, 1
        %s215 = smul.addr %s214, 256
        %s216 = scalar_lea.vmem [#allocation3], %s215
        // Predicated region
        $region33: #{tpu_custom_call.1} parent=31 // pred_check
          %p217 = pneg %p58
        $region34: #{tpu_custom_call.1} parent=31 // pred_check_branch
          %219 = sbr.rel (%p217) target = $region36
        $region35: #{tpu_custom_call.1} parent=31 // pred_region
          %220 = dma.done %s213, 4096
        $region36: #{tpu_custom_call.1} parent=31 // pred_fallthru
          _
        %s221 = sand.u32 %s71, 1
        %s222 = scalar_lea.sflag [#allocation7], %s221
        %s223 = sand.u32 %s71, 1
        %s224 = smul.addr %s223, 256
        %s225 = scalar_lea.vmem [#allocation6], %s224
        // Predicated region
        $region37: #{tpu_custom_call.1} parent=31 // pred_check
          %p226 = pneg %p84
        $region38: #{tpu_custom_call.1} parent=31 // pred_check_branch
          %228 = sbr.rel (%p226) target = $region40
        $region39: #{tpu_custom_call.1} parent=31 // pred_region
          %229 = dma.done %s222, 4096
        $region40: #{tpu_custom_call.1} parent=31 // pred_fallthru
          _
        %s230 = sand.u32 %s45, 1
        %s231 = scalar_lea.sflag [#allocation4], %s230
        %s232 = sand.u32 %s45, 1
        %s233 = smul.addr %s232, 256
        %s234 = scalar_lea.vmem [#allocation3], %s233
        %p235 = pneg %p58
        %p236 = pneg %p55
        %s237 = sand.u32 %s71, 1
        %s238 = scalar_lea.sflag [#allocation7], %s237
        %s239 = sand.u32 %s71, 1
        %s240 = smul.addr %s239, 256
        %s241 = scalar_lea.vmem [#allocation6], %s240
        %p242 = pneg %p84
        %p243 = pneg %p81
        %p244 = pneg %p105
        %p245 = pneg %p102
        %p246 = pneg %p131
        %p247 = pneg %p128
        %s248 = sand.u32 %s118, 1
        %s249 = scalar_lea.sflag [#allocation5], %s248
        %s250 = sand.u32 %s118, 1
        %s251 = smul.addr %s250, 128
        %s252 = scalar_lea.vmem [#allocation8], %s251
        %s253 = smul.u32 16, %s27
        %s254 = smul.u32 4, %s28
        %s255 = ssub.s32 25, %s253
        %p256 = scmp.lt.s32.totalorder %s255, 16
        %s257 = scalar_select %p256, %s255, 16
        %s258 = smul.u32 64, %s257
        %s259 = smul.u32 %s258, 4
        %s260 = smul.u32 64, %s28
        %s261 = smul.u32 16, %s27
        %s262 = ssub.s32 25, %s261
        %p263 = scmp.lt.s32.totalorder %s262, 16
        %s264 = scalar_select %p263, %s262, 16
        %s265 = smul.u32 128, %s264
        %p267 = scmp.eq.s32.totalorder %s28, 0
        // Predicated region
        $region41: #{tpu_custom_call.1} parent=31 // pred_check
          %p268 = pneg %p267
        $region42: #{tpu_custom_call.1} parent=31 // pred_check_branch
          %270 = sbr.rel (%p268) target = $region44
        $region43: #{tpu_custom_call.1} parent=31 // pred_region
          %271 = vst [vmem:[#allocation2] sm:$0xff] 0.0
          %272 = vst [vmem:[#allocation2 + $0x8] sm:$0xff] 0.0
          %273 = vst [vmem:[#allocation2 + $0x10] sm:$0xff] 0.0
          %274 = vst [vmem:[#allocation2 + $0x18] sm:$0xff] 0.0
          %275 = vst [vmem:[#allocation2 + $0x20] sm:$0xff] 0.0
          %276 = vst [vmem:[#allocation2 + $0x28] sm:$0xff] 0.0
          %277 = vst [vmem:[#allocation2 + $0x30] sm:$0xff] 0.0
          %278 = vst [vmem:[#allocation2 + $0x38] sm:$0xff] 0.0
          %279 = vst [vmem:[#allocation2 + $0x40] sm:$0xff] 0.0
          %280 = vst [vmem:[#allocation2 + $0x48] sm:$0xff] 0.0
          %281 = vst [vmem:[#allocation2 + $0x50] sm:$0xff] 0.0
          %282 = vst [vmem:[#allocation2 + $0x58] sm:$0xff] 0.0
          %283 = vst [vmem:[#allocation2 + $0x60] sm:$0xff] 0.0
          %284 = vst [vmem:[#allocation2 + $0x68] sm:$0xff] 0.0
          %285 = vst [vmem:[#allocation2 + $0x70] sm:$0xff] 0.0
          %286 = vst [vmem:[#allocation2 + $0x78] sm:$0xff] 0.0
        $region44: #{tpu_custom_call.1} parent=31 // pred_fallthru
          _
        %v287 = vld [vmem:[#allocation2] sm:$0xff]
        %v288 = vld [vmem:[#allocation2 + $0x8] sm:$0xff]
        %v289 = vld [vmem:[#allocation2 + $0x10] sm:$0xff]
        %v290 = vld [vmem:[#allocation2 + $0x18] sm:$0xff]
        %v291 = vld [vmem:[#allocation2 + $0x20] sm:$0xff]
        %v292 = vld [vmem:[#allocation2 + $0x28] sm:$0xff]
        %v293 = vld [vmem:[#allocation2 + $0x30] sm:$0xff]
        %v294 = vld [vmem:[#allocation2 + $0x38] sm:$0xff]
        %v295 = vld [vmem:[#allocation2 + $0x40] sm:$0xff]
        %v296 = vld [vmem:[#allocation2 + $0x48] sm:$0xff]
        %v297 = vld [vmem:[#allocation2 + $0x50] sm:$0xff]
        %v298 = vld [vmem:[#allocation2 + $0x58] sm:$0xff]
        %v299 = vld [vmem:[#allocation2 + $0x60] sm:$0xff]
        %v300 = vld [vmem:[#allocation2 + $0x68] sm:$0xff]
        %v301 = vld [vmem:[#allocation2 + $0x70] sm:$0xff]
        %v302 = vld [vmem:[#allocation2 + $0x78] sm:$0xff]
        %v303 = vld [vmem:[%s216] sm:$0xff]
        %v304 = vld [vmem:[%s216 + $0x8] sm:$0xff]
        %v305 = vld [vmem:[%s216 + $0x10] sm:$0xff]
        %v306 = vld [vmem:[%s216 + $0x18] sm:$0xff]
        %v307 = vld [vmem:[%s216 + $0x20] sm:$0xff]
        %v308 = vld [vmem:[%s216 + $0x28] sm:$0xff]
        %v309 = vld [vmem:[%s216 + $0x30] sm:$0xff]
        %v310 = vld [vmem:[%s216 + $0x38] sm:$0xff]
        %v311 = vld [vmem:[%s216 + $0x40] sm:$0xff]
        %v312 = vld [vmem:[%s216 + $0x48] sm:$0xff]
        %v313 = vld [vmem:[%s216 + $0x50] sm:$0xff]
        %v314 = vld [vmem:[%s216 + $0x58] sm:$0xff]
        %v315 = vld [vmem:[%s216 + $0x60] sm:$0xff]
        %v316 = vld [vmem:[%s216 + $0x68] sm:$0xff]
        %v317 = vld [vmem:[%s216 + $0x70] sm:$0xff]
        %v318 = vld [vmem:[%s216 + $0x78] sm:$0xff]
        %v319 = vld [vmem:[%s216 + $0x80] sm:$0xff]
        %v320 = vld [vmem:[%s216 + $0x88] sm:$0xff]
        %v321 = vld [vmem:[%s216 + $0x90] sm:$0xff]
        %v322 = vld [vmem:[%s216 + $0x98] sm:$0xff]
        %v323 = vld [vmem:[%s216 + $0xa0] sm:$0xff]
        %v324 = vld [vmem:[%s216 + $0xa8] sm:$0xff]
        %v325 = vld [vmem:[%s216 + $0xb0] sm:$0xff]
        %v326 = vld [vmem:[%s216 + $0xb8] sm:$0xff]
        %v327 = vld [vmem:[%s216 + $0xc0] sm:$0xff]
        %v328 = vld [vmem:[%s216 + $0xc8] sm:$0xff]
        %v329 = vld [vmem:[%s216 + $0xd0] sm:$0xff]
        %v330 = vld [vmem:[%s216 + $0xd8] sm:$0xff]
        %v331 = vld [vmem:[%s216 + $0xe0] sm:$0xff]
        %v332 = vld [vmem:[%s216 + $0xe8] sm:$0xff]
        %v333 = vld [vmem:[%s216 + $0xf0] sm:$0xff]
        %v334 = vld [vmem:[%s216 + $0xf8] sm:$0xff]
        %v335 = vld [vmem:[%s225] sm:$0xf]
        %v336 = vld [vmem:[%s225 + $0x4] sm:$0xf]
        %v337 = vld [vmem:[%s225 + $0x8] sm:$0xf]
        %v338 = vld [vmem:[%s225 + $0xc] sm:$0xf]
        %v339 = vld [vmem:[%s225 + $0x10] sm:$0xf]
        %v340 = vld [vmem:[%s225 + $0x14] sm:$0xf]
        %v341 = vld [vmem:[%s225 + $0x18] sm:$0xf]
        %v342 = vld [vmem:[%s225 + $0x1c] sm:$0xf]
        %v343 = vld [vmem:[%s225 + $0x20] sm:$0xf]
        %v344 = vld [vmem:[%s225 + $0x24] sm:$0xf]
        %v345 = vld [vmem:[%s225 + $0x28] sm:$0xf]
        %v346 = vld [vmem:[%s225 + $0x2c] sm:$0xf]
        %v347 = vld [vmem:[%s225 + $0x30] sm:$0xf]
        %v348 = vld [vmem:[%s225 + $0x34] sm:$0xf]
        %v349 = vld [vmem:[%s225 + $0x38] sm:$0xf]
        %v350 = vld [vmem:[%s225 + $0x3c] sm:$0xf]
        %v351 = vld [vmem:[%s225 + $0x40] sm:$0xf]
        %v352 = vld [vmem:[%s225 + $0x44] sm:$0xf]
        %v353 = vld [vmem:[%s225 + $0x48] sm:$0xf]
        %v354 = vld [vmem:[%s225 + $0x4c] sm:$0xf]
        %v355 = vld [vmem:[%s225 + $0x50] sm:$0xf]
        %v356 = vld [vmem:[%s225 + $0x54] sm:$0xf]
        %v357 = vld [vmem:[%s225 + $0x58] sm:$0xf]
        %v358 = vld [vmem:[%s225 + $0x5c] sm:$0xf]
        %v359 = vld [vmem:[%s225 + $0x60] sm:$0xf]
        %v360 = vld [vmem:[%s225 + $0x64] sm:$0xf]
        %v361 = vld [vmem:[%s225 + $0x68] sm:$0xf]
        %v362 = vld [vmem:[%s225 + $0x6c] sm:$0xf]
        %v363 = vld [vmem:[%s225 + $0x70] sm:$0xf]
        %v364 = vld [vmem:[%s225 + $0x74] sm:$0xf]
        %v365 = vld [vmem:[%s225 + $0x78] sm:$0xf]
        %v366 = vld [vmem:[%s225 + $0x7c] sm:$0xf]
        %v367 = vld [vmem:[%s225 + $0x80] sm:$0xf]
        %v368 = vld [vmem:[%s225 + $0x84] sm:$0xf]
        %v369 = vld [vmem:[%s225 + $0x88] sm:$0xf]
        %v370 = vld [vmem:[%s225 + $0x8c] sm:$0xf]
        %v371 = vld [vmem:[%s225 + $0x90] sm:$0xf]
        %v372 = vld [vmem:[%s225 + $0x94] sm:$0xf]
        %v373 = vld [vmem:[%s225 + $0x98] sm:$0xf]
        %v374 = vld [vmem:[%s225 + $0x9c] sm:$0xf]
        %v375 = vld [vmem:[%s225 + $0xa0] sm:$0xf]
        %v376 = vld [vmem:[%s225 + $0xa4] sm:$0xf]
        %v377 = vld [vmem:[%s225 + $0xa8] sm:$0xf]
        %v378 = vld [vmem:[%s225 + $0xac] sm:$0xf]
        %v379 = vld [vmem:[%s225 + $0xb0] sm:$0xf]
        %v380 = vld [vmem:[%s225 + $0xb4] sm:$0xf]
        %v381 = vld [vmem:[%s225 + $0xb8] sm:$0xf]
        %v382 = vld [vmem:[%s225 + $0xbc] sm:$0xf]
        %v383 = vld [vmem:[%s225 + $0xc0] sm:$0xf]
        %v384 = vld [vmem:[%s225 + $0xc4] sm:$0xf]
        %v385 = vld [vmem:[%s225 + $0xc8] sm:$0xf]
        %v386 = vld [vmem:[%s225 + $0xcc] sm:$0xf]
        %v387 = vld [vmem:[%s225 + $0xd0] sm:$0xf]
        %v388 = vld [vmem:[%s225 + $0xd4] sm:$0xf]
        %v389 = vld [vmem:[%s225 + $0xd8] sm:$0xf]
        %v390 = vld [vmem:[%s225 + $0xdc] sm:$0xf]
        %v391 = vld [vmem:[%s225 + $0xe0] sm:$0xf]
        %v392 = vld [vmem:[%s225 + $0xe4] sm:$0xf]
        %v393 = vld [vmem:[%s225 + $0xe8] sm:$0xf]
        %v394 = vld [vmem:[%s225 + $0xec] sm:$0xf]
        %v395 = vld [vmem:[%s225 + $0xf0] sm:$0xf]
        %v396 = vld [vmem:[%s225 + $0xf4] sm:$0xf]
        %v397 = vld [vmem:[%s225 + $0xf8] sm:$0xf]
        %v398 = vld [vmem:[%s225 + $0xfc] sm:$0xf]
        %v431 = vunpack.c.l.b16 %v303
        %v432 = vunpack.c.h.b16 %v303
        %v433 = vunpack.c.l.b16 %v304
        %v434 = vunpack.c.h.b16 %v304
        %v435 = vunpack.c.l.b16 %v305
        %v436 = vunpack.c.h.b16 %v305
        %v437 = vunpack.c.l.b16 %v306
        %v438 = vunpack.c.h.b16 %v306
        %v439 = vunpack.c.l.b16 %v307
        %v440 = vunpack.c.h.b16 %v307
        %v441 = vunpack.c.l.b16 %v308
        %v442 = vunpack.c.h.b16 %v308
        %v443 = vunpack.c.l.b16 %v309
        %v444 = vunpack.c.h.b16 %v309
        %v445 = vunpack.c.l.b16 %v310
        %v446 = vunpack.c.h.b16 %v310
        %v447 = vunpack.c.l.b16 %v311
        %v448 = vunpack.c.h.b16 %v311
        %v449 = vunpack.c.l.b16 %v312
        %v450 = vunpack.c.h.b16 %v312
        %v451 = vunpack.c.l.b16 %v313
        %v452 = vunpack.c.h.b16 %v313
        %v453 = vunpack.c.l.b16 %v314
        %v454 = vunpack.c.h.b16 %v314
        %v455 = vunpack.c.l.b16 %v315
        %v456 = vunpack.c.h.b16 %v315
        %v457 = vunpack.c.l.b16 %v316
        %v458 = vunpack.c.h.b16 %v316
        %v459 = vunpack.c.l.b16 %v317
        %v460 = vunpack.c.h.b16 %v317
        %v461 = vunpack.c.l.b16 %v318
        %v462 = vunpack.c.h.b16 %v318
        %v463 = vunpack.c.l.b16 %v319
        %v464 = vunpack.c.h.b16 %v319
        %v465 = vunpack.c.l.b16 %v320
        %v466 = vunpack.c.h.b16 %v320
        %v467 = vunpack.c.l.b16 %v321
        %v468 = vunpack.c.h.b16 %v321
        %v469 = vunpack.c.l.b16 %v322
        %v470 = vunpack.c.h.b16 %v322
        %v471 = vunpack.c.l.b16 %v323
        %v472 = vunpack.c.h.b16 %v323
        %v473 = vunpack.c.l.b16 %v324
        %v474 = vunpack.c.h.b16 %v324
        %v475 = vunpack.c.l.b16 %v325
        %v476 = vunpack.c.h.b16 %v325
        %v477 = vunpack.c.l.b16 %v326
        %v478 = vunpack.c.h.b16 %v326
        %v479 = vunpack.c.l.b16 %v327
        %v480 = vunpack.c.h.b16 %v327
        %v481 = vunpack.c.l.b16 %v328
        %v482 = vunpack.c.h.b16 %v328
        %v483 = vunpack.c.l.b16 %v329
        %v484 = vunpack.c.h.b16 %v329
        %v485 = vunpack.c.l.b16 %v330
        %v486 = vunpack.c.h.b16 %v330
        %v487 = vunpack.c.l.b16 %v331
        %v488 = vunpack.c.h.b16 %v331
        %v489 = vunpack.c.l.b16 %v332
        %v490 = vunpack.c.h.b16 %v332
        %v491 = vunpack.c.l.b16 %v333
        %v492 = vunpack.c.h.b16 %v333
        %v493 = vunpack.c.l.b16 %v334
        %v494 = vunpack.c.h.b16 %v334
        %v495 = vpack.c.b16 %v435, %v431
        %v496 = vpack.c.b16 %v436, %v432
        %v497 = vpack.c.b16 %v437, %v433
        %v498 = vpack.c.b16 %v438, %v434
        %v499 = vpack.c.b16 %v443, %v439
        %v500 = vpack.c.b16 %v444, %v440
        %v501 = vpack.c.b16 %v445, %v441
        %v502 = vpack.c.b16 %v446, %v442
        %v503 = vpack.c.b16 %v451, %v447
        %v504 = vpack.c.b16 %v452, %v448
        %v505 = vpack.c.b16 %v453, %v449
        %v506 = vpack.c.b16 %v454, %v450
        %v507 = vpack.c.b16 %v459, %v455
        %v508 = vpack.c.b16 %v460, %v456
        %v509 = vpack.c.b16 %v461, %v457
        %v510 = vpack.c.b16 %v462, %v458
        %v511 = vpack.c.b16 %v467, %v463
        %v512 = vpack.c.b16 %v468, %v464
        %v513 = vpack.c.b16 %v469, %v465
        %v514 = vpack.c.b16 %v470, %v466
        %v515 = vpack.c.b16 %v475, %v471
        %v516 = vpack.c.b16 %v476, %v472
        %v517 = vpack.c.b16 %v477, %v473
        %v518 = vpack.c.b16 %v478, %v474
        %v519 = vpack.c.b16 %v483, %v479
        %v520 = vpack.c.b16 %v484, %v480
        %v521 = vpack.c.b16 %v485, %v481
        %v522 = vpack.c.b16 %v486, %v482
        %v523 = vpack.c.b16 %v491, %v487
        %v524 = vpack.c.b16 %v492, %v488
        %v525 = vpack.c.b16 %v493, %v489
        %v526 = vpack.c.b16 %v494, %v490
        %v623 = vunpack.c.l.b16 %v335
        %v624 = vunpack.c.l.b16 %v336
        %v625 = vunpack.c.l.b16 %v337
        %v626 = vunpack.c.l.b16 %v338
        %v627 = vunpack.c.l.b16 %v339
        %v628 = vunpack.c.l.b16 %v340
        %v629 = vunpack.c.l.b16 %v341
        %v630 = vunpack.c.l.b16 %v342
        %v631 = vunpack.c.l.b16 %v343
        %v632 = vunpack.c.l.b16 %v344
        %v633 = vunpack.c.l.b16 %v345
        %v634 = vunpack.c.l.b16 %v346
        %v635 = vunpack.c.l.b16 %v347
        %v636 = vunpack.c.l.b16 %v348
        %v637 = vunpack.c.l.b16 %v349
        %v638 = vunpack.c.l.b16 %v350
        %v639 = vunpack.c.l.b16 %v351
        %v640 = vunpack.c.l.b16 %v352
        %v641 = vunpack.c.l.b16 %v353
        %v642 = vunpack.c.l.b16 %v354
        %v643 = vunpack.c.l.b16 %v355
        %v644 = vunpack.c.l.b16 %v356
        %v645 = vunpack.c.l.b16 %v357
        %v646 = vunpack.c.l.b16 %v358
        %v647 = vunpack.c.l.b16 %v359
        %v648 = vunpack.c.l.b16 %v360
        %v649 = vunpack.c.l.b16 %v361
        %v650 = vunpack.c.l.b16 %v362
        %v651 = vunpack.c.l.b16 %v363
        %v652 = vunpack.c.l.b16 %v364
        %v653 = vunpack.c.l.b16 %v365
        %v654 = vunpack.c.l.b16 %v366
        %v655 = vunpack.c.l.b16 %v367
        %v656 = vunpack.c.l.b16 %v368
        %v657 = vunpack.c.l.b16 %v369
        %v658 = vunpack.c.l.b16 %v370
        %v659 = vunpack.c.l.b16 %v371
        %v660 = vunpack.c.l.b16 %v372
        %v661 = vunpack.c.l.b16 %v373
        %v662 = vunpack.c.l.b16 %v374
        %v663 = vunpack.c.l.b16 %v375
        %v664 = vunpack.c.l.b16 %v376
        %v665 = vunpack.c.l.b16 %v377
        %v666 = vunpack.c.l.b16 %v378
        %v667 = vunpack.c.l.b16 %v379
        %v668 = vunpack.c.l.b16 %v380
        %v669 = vunpack.c.l.b16 %v381
        %v670 = vunpack.c.l.b16 %v382
        %v671 = vunpack.c.l.b16 %v383
        %v672 = vunpack.c.l.b16 %v384
        %v673 = vunpack.c.l.b16 %v385
        %v674 = vunpack.c.l.b16 %v386
        %v675 = vunpack.c.l.b16 %v387
        %v676 = vunpack.c.l.b16 %v388
        %v677 = vunpack.c.l.b16 %v389
        %v678 = vunpack.c.l.b16 %v390
        %v679 = vunpack.c.l.b16 %v391
        %v680 = vunpack.c.l.b16 %v392
        %v681 = vunpack.c.l.b16 %v393
        %v682 = vunpack.c.l.b16 %v394
        %v683 = vunpack.c.l.b16 %v395
        %v684 = vunpack.c.l.b16 %v396
        %v685 = vunpack.c.l.b16 %v397
        %v686 = vunpack.c.l.b16 %v398
        %v687 = vpack.c.b16 %v624, %v623
        %v688 = vpack.c.b16 %v626, %v625
        %v689 = vpack.c.b16 %v628, %v627
        %v690 = vpack.c.b16 %v630, %v629
        %v691 = vpack.c.b16 %v632, %v631
        %v692 = vpack.c.b16 %v634, %v633
        %v693 = vpack.c.b16 %v636, %v635
        %v694 = vpack.c.b16 %v638, %v637
        %v695 = vpack.c.b16 %v640, %v639
        %v696 = vpack.c.b16 %v642, %v641
        %v697 = vpack.c.b16 %v644, %v643
        %v698 = vpack.c.b16 %v646, %v645
        %v699 = vpack.c.b16 %v648, %v647
        %v700 = vpack.c.b16 %v650, %v649
        %v701 = vpack.c.b16 %v652, %v651
        %v702 = vpack.c.b16 %v654, %v653
        %v703 = vpack.c.b16 %v656, %v655
        %v704 = vpack.c.b16 %v658, %v657
        %v705 = vpack.c.b16 %v660, %v659
        %v706 = vpack.c.b16 %v662, %v661
        %v707 = vpack.c.b16 %v664, %v663
        %v708 = vpack.c.b16 %v666, %v665
        %v709 = vpack.c.b16 %v668, %v667
        %v710 = vpack.c.b16 %v670, %v669
        %v711 = vpack.c.b16 %v672, %v671
        %v712 = vpack.c.b16 %v674, %v673
        %v713 = vpack.c.b16 %v676, %v675
        %v714 = vpack.c.b16 %v678, %v677
        %v715 = vpack.c.b16 %v680, %v679
        %v716 = vpack.c.b16 %v682, %v681
        %v717 = vpack.c.b16 %v684, %v683
        %v718 = vpack.c.b16 %v686, %v685
        %751 = vmatprep.subr.bf16.mxu0 0
        %752 = vmatpush1.bf16.msra.mxu0 %v687
        %753 = vmatprep.subr.bf16.mxu0 0
        %754 = vmatpush1.bf16.msra.mxu0 %v688
        %755 = vmatprep.subr.bf16.mxu0 0
        %756 = vmatpush1.bf16.msra.mxu0 %v689
        %757 = vmatprep.subr.bf16.mxu0 0
        %758 = vmatpush1.bf16.msra.mxu0 %v690
        %759 = vmatprep.subr.bf16.mxu0 0
        %760 = vmatpush1.bf16.msra.mxu0 %v691
        %761 = vmatprep.subr.bf16.mxu0 0
        %762 = vmatpush1.bf16.msra.mxu0 %v692
        %763 = vmatprep.subr.bf16.mxu0 0
        %764 = vmatpush1.bf16.msra.mxu0 %v693
        %765 = vmatprep.subr.bf16.mxu0 0
        %766 = vmatpush1.bf16.msra.mxu0 %v694
        %767 = vmatprep.subr.bf16.mxu0 0
        %768 = vmatpush1.bf16.msra.mxu0 %v695
        %769 = vmatprep.subr.bf16.mxu0 0
        %770 = vmatpush1.bf16.msra.mxu0 %v696
        %771 = vmatprep.subr.bf16.mxu0 0
        %772 = vmatpush1.bf16.msra.mxu0 %v697
        %773 = vmatprep.subr.bf16.mxu0 0
        %774 = vmatpush1.bf16.msra.mxu0 %v698
        %775 = vmatprep.subr.bf16.mxu0 0
        %776 = vmatpush1.bf16.msra.mxu0 %v699
        %777 = vmatprep.subr.bf16.mxu0 0
        %778 = vmatpush1.bf16.msra.mxu0 %v700
        %779 = vmatprep.subr.bf16.mxu0 0
        %780 = vmatpush1.bf16.msra.mxu0 %v701
        %781 = vmatprep.subr.bf16.mxu0 0
        %782 = vmatpush1.bf16.msra.mxu0 %v702
        %783 = vmatprep.mubr.bf16.mxu0 %v496
        %784 = vmatmul.mubr.bf16.gmra.mrb[0].mxu0 %v495
        %v785 = vpop.f32.mrb[0].mxu0
        %v786 = vadd.f32 0.0, %v785
        %v787 = vpop.f32.mrb[0].mxu0
        %v788 = vpop.f32.mrb[0].mxu0
        %v789 = vadd.f32 0.0, %v788
        %v790 = vpop.f32.mrb[0].mxu0
        %791 = vmatprep.mubr.bf16.mxu0 %v500
        %792 = vmatmul.mubr.bf16.gmra.mrb[0].mxu0 %v499
        %v793 = vpop.f32.mrb[0].mxu0
        %v794 = vadd.f32 0.0, %v793
        %v795 = vpop.f32.mrb[0].mxu0
        %v796 = vpop.f32.mrb[0].mxu0
        %v797 = vadd.f32 0.0, %v796
        %v798 = vpop.f32.mrb[0].mxu0
        %799 = vmatprep.mubr.bf16.mxu0 %v504
        %800 = vmatmul.mubr.bf16.gmra.mrb[0].mxu0 %v503
        %v801 = vpop.f32.mrb[0].mxu0
        %v802 = vadd.f32 0.0, %v801
        %v803 = vpop.f32.mrb[0].mxu0
        %v804 = vpop.f32.mrb[0].mxu0
        %v805 = vadd.f32 0.0, %v804
        %v806 = vpop.f32.mrb[0].mxu0
        %807 = vmatprep.mubr.bf16.mxu0 %v508
        %808 = vmatmul.mubr.bf16.gmra.mrb[0].mxu0 %v507
        %v809 = vpop.f32.mrb[0].mxu0
        %v810 = vadd.f32 0.0, %v809
        %v811 = vpop.f32.mrb[0].mxu0
        %v812 = vpop.f32.mrb[0].mxu0
        %v813 = vadd.f32 0.0, %v812
        %v814 = vpop.f32.mrb[0].mxu0
        %815 = vmatprep.mubr.bf16.mxu0 %v512
        %816 = vmatmul.mubr.bf16.gmra.mrb[0].mxu0 %v511
        %v817 = vpop.f32.mrb[0].mxu0
        %v818 = vadd.f32 0.0, %v817
        %v819 = vpop.f32.mrb[0].mxu0
        %v820 = vpop.f32.mrb[0].mxu0
        %v821 = vadd.f32 0.0, %v820
        %v822 = vpop.f32.mrb[0].mxu0
        %823 = vmatprep.mubr.bf16.mxu0 %v516
        %824 = vmatmul.mubr.bf16.gmra.mrb[0].mxu0 %v515
        %v825 = vpop.f32.mrb[0].mxu0
        %v826 = vadd.f32 0.0, %v825
        %v827 = vpop.f32.mrb[0].mxu0
        %v828 = vpop.f32.mrb[0].mxu0
        %v829 = vadd.f32 0.0, %v828
        %v830 = vpop.f32.mrb[0].mxu0
        %831 = vmatprep.mubr.bf16.mxu0 %v520
        %832 = vmatmul.mubr.bf16.gmra.mrb[0].mxu0 %v519
        %v833 = vpop.f32.mrb[0].mxu0
        %v834 = vadd.f32 0.0, %v833
        %v835 = vpop.f32.mrb[0].mxu0
        %v836 = vpop.f32.mrb[0].mxu0
        %v837 = vadd.f32 0.0, %v836
        %v838 = vpop.f32.mrb[0].mxu0
        %839 = vmatprep.mubr.bf16.mxu0 %v524
        %840 = vmatmul.mubr.bf16.gmra.mrb[0].mxu0 %v523
        %v841 = vpop.f32.mrb[0].mxu0
        %v842 = vadd.f32 0.0, %v841
        %v843 = vpop.f32.mrb[0].mxu0
        %v844 = vpop.f32.mrb[0].mxu0
        %v845 = vadd.f32 0.0, %v844
        %v846 = vpop.f32.mrb[0].mxu0
        %847 = vdwg.mxu0
        %848 = vmatprep.subr.bf16.mxu0 0
        %849 = vmatpush1.bf16.msra.mxu0 %v703
        %850 = vmatprep.subr.bf16.mxu0 0
        %851 = vmatpush1.bf16.msra.mxu0 %v704
        %852 = vmatprep.subr.bf16.mxu0 0
        %853 = vmatpush1.bf16.msra.mxu0 %v705
        %854 = vmatprep.subr.bf16.mxu0 0
        %855 = vmatpush1.bf16.msra.mxu0 %v706
        %856 = vmatprep.subr.bf16.mxu0 0
        %857 = vmatpush1.bf16.msra.mxu0 %v707
        %858 = vmatprep.subr.bf16.mxu0 0
        %859 = vmatpush1.bf16.msra.mxu0 %v708
        %860 = vmatprep.subr.bf16.mxu0 0
        %861 = vmatpush1.bf16.msra.mxu0 %v709
        %862 = vmatprep.subr.bf16.mxu0 0
        %863 = vmatpush1.bf16.msra.mxu0 %v710
        %864 = vmatprep.subr.bf16.mxu0 0
        %865 = vmatpush1.bf16.msra.mxu0 %v711
        %866 = vmatprep.subr.bf16.mxu0 0
        %867 = vmatpush1.bf16.msra.mxu0 %v712
        %868 = vmatprep.subr.bf16.mxu0 0
        %869 = vmatpush1.bf16.msra.mxu0 %v713
        %870 = vmatprep.subr.bf16.mxu0 0
        %871 = vmatpush1.bf16.msra.mxu0 %v714
        %872 = vmatprep.subr.bf16.mxu0 0
        %873 = vmatpush1.bf16.msra.mxu0 %v715
        %874 = vmatprep.subr.bf16.mxu0 0
        %875 = vmatpush1.bf16.msra.mxu0 %v716
        %876 = vmatprep.subr.bf16.mxu0 0
        %877 = vmatpush1.bf16.msra.mxu0 %v717
        %878 = vmatprep.subr.bf16.mxu0 0
        %879 = vmatpush1.bf16.msra.mxu0 %v718
        %880 = vmatprep.mubr.bf16.mxu0 %v498
        %881 = vmatmul.mubr.bf16.gmra.mrb[0].mxu0 %v497
        %v882 = vpop.f32.mrb[0].mxu0
        %v883 = vadd.f32 %v786, %v882
        %v884 = vpop.f32.mrb[0].mxu0
        %v885 = vpop.f32.mrb[0].mxu0
        %v886 = vadd.f32 %v789, %v885
        %v887 = vpop.f32.mrb[0].mxu0
        %888 = vmatprep.mubr.bf16.mxu0 %v502
        %889 = vmatmul.mubr.bf16.gmra.mrb[0].mxu0 %v501
        %v890 = vpop.f32.mrb[0].mxu0
        %v891 = vadd.f32 %v794, %v890
        %v892 = vpop.f32.mrb[0].mxu0
        %v893 = vpop.f32.mrb[0].mxu0
        %v894 = vadd.f32 %v797, %v893
        %v895 = vpop.f32.mrb[0].mxu0
        %896 = vmatprep.mubr.bf16.mxu0 %v506
        %897 = vmatmul.mubr.bf16.gmra.mrb[0].mxu0 %v505
        %v898 = vpop.f32.mrb[0].mxu0
        %v899 = vadd.f32 %v802, %v898
        %v900 = vpop.f32.mrb[0].mxu0
        %v901 = vpop.f32.mrb[0].mxu0
        %v902 = vadd.f32 %v805, %v901
        %v903 = vpop.f32.mrb[0].mxu0
        %904 = vmatprep.mubr.bf16.mxu0 %v510
        %905 = vmatmul.mubr.bf16.gmra.mrb[0].mxu0 %v509
        %v906 = vpop.f32.mrb[0].mxu0
        %v907 = vadd.f32 %v810, %v906
        %v908 = vpop.f32.mrb[0].mxu0
        %v909 = vpop.f32.mrb[0].mxu0
        %v910 = vadd.f32 %v813, %v909
        %v911 = vpop.f32.mrb[0].mxu0
        %912 = vmatprep.mubr.bf16.mxu0 %v514
        %913 = vmatmul.mubr.bf16.gmra.mrb[0].mxu0 %v513
        %v914 = vpop.f32.mrb[0].mxu0
        %v915 = vadd.f32 %v818, %v914
        %v916 = vpop.f32.mrb[0].mxu0
        %v917 = vpop.f32.mrb[0].mxu0
        %v918 = vadd.f32 %v821, %v917
        %v919 = vpop.f32.mrb[0].mxu0
        %920 = vmatprep.mubr.bf16.mxu0 %v518
        %921 = vmatmul.mubr.bf16.gmra.mrb[0].mxu0 %v517
        %v922 = vpop.f32.mrb[0].mxu0
        %v923 = vadd.f32 %v826, %v922
        %v924 = vpop.f32.mrb[0].mxu0
        %v925 = vpop.f32.mrb[0].mxu0
        %v926 = vadd.f32 %v829, %v925
        %v927 = vpop.f32.mrb[0].mxu0
        %928 = vmatprep.mubr.bf16.mxu0 %v522
        %929 = vmatmul.mubr.bf16.gmra.mrb[0].mxu0 %v521
        %v930 = vpop.f32.mrb[0].mxu0
        %v931 = vadd.f32 %v834, %v930
        %v932 = vpop.f32.mrb[0].mxu0
        %v933 = vpop.f32.mrb[0].mxu0
        %v934 = vadd.f32 %v837, %v933
        %v935 = vpop.f32.mrb[0].mxu0
        %936 = vmatprep.mubr.bf16.mxu0 %v526
        %937 = vmatmul.mubr.bf16.gmra.mrb[0].mxu0 %v525
        %v938 = vpop.f32.mrb[0].mxu0
        %v939 = vadd.f32 %v842, %v938
        %v940 = vpop.f32.mrb[0].mxu0
        %v941 = vpop.f32.mrb[0].mxu0
        %v942 = vadd.f32 %v845, %v941
        %v943 = vpop.f32.mrb[0].mxu0
        %944 = vdwg.mxu0
        %v945 = vadd.f32 %v287, %v883
        %v946 = vadd.f32 %v288, %v886
        %v947 = vadd.f32 %v289, %v891
        %v948 = vadd.f32 %v290, %v894
        %v949 = vadd.f32 %v291, %v899
        %v950 = vadd.f32 %v292, %v902
        %v951 = vadd.f32 %v293, %v907
        %v952 = vadd.f32 %v294, %v910
        %v953 = vadd.f32 %v295, %v915
        %v954 = vadd.f32 %v296, %v918
        %v955 = vadd.f32 %v297, %v923
        %v956 = vadd.f32 %v298, %v926
        %v957 = vadd.f32 %v299, %v931
        %v958 = vadd.f32 %v300, %v934
        %v959 = vadd.f32 %v301, %v939
        %v960 = vadd.f32 %v302, %v942
        %961 = vst [vmem:[#allocation2] sm:$0xff] %v945
        %962 = vst [vmem:[#allocation2 + $0x8] sm:$0xff] %v946
        %963 = vst [vmem:[#allocation2 + $0x10] sm:$0xff] %v947
        %964 = vst [vmem:[#allocation2 + $0x18] sm:$0xff] %v948
        %965 = vst [vmem:[#allocation2 + $0x20] sm:$0xff] %v949
        %966 = vst [vmem:[#allocation2 + $0x28] sm:$0xff] %v950
        %967 = vst [vmem:[#allocation2 + $0x30] sm:$0xff] %v951
        %968 = vst [vmem:[#allocation2 + $0x38] sm:$0xff] %v952
        %969 = vst [vmem:[#allocation2 + $0x40] sm:$0xff] %v953
        %970 = vst [vmem:[#allocation2 + $0x48] sm:$0xff] %v954
        %971 = vst [vmem:[#allocation2 + $0x50] sm:$0xff] %v955
        %972 = vst [vmem:[#allocation2 + $0x58] sm:$0xff] %v956
        %973 = vst [vmem:[#allocation2 + $0x60] sm:$0xff] %v957
        %974 = vst [vmem:[#allocation2 + $0x68] sm:$0xff] %v958
        %975 = vst [vmem:[#allocation2 + $0x70] sm:$0xff] %v959
        %976 = vst [vmem:[#allocation2 + $0x78] sm:$0xff] %v960
        %p977 = scmp.eq.s32.totalorder %s28, 2
        // Predicated region
        $region45: #{tpu_custom_call.1} parent=31 // pred_check
          %p978 = pneg %p977
        $region46: #{tpu_custom_call.1} parent=31 // pred_check_branch
          %980 = sbr.rel (%p978) target = $region48
        $region47: #{tpu_custom_call.1} parent=31 // pred_region
          %v981 = vld [vmem:[#allocation2] sm:$0xff]
          %v982 = vld [vmem:[#allocation2 + $0x8] sm:$0xff]
          %v983 = vld [vmem:[#allocation2 + $0x10] sm:$0xff]
          %v984 = vld [vmem:[#allocation2 + $0x18] sm:$0xff]
          %v985 = vld [vmem:[#allocation2 + $0x20] sm:$0xff]
          %v986 = vld [vmem:[#allocation2 + $0x28] sm:$0xff]
          %v987 = vld [vmem:[#allocation2 + $0x30] sm:$0xff]
          %v988 = vld [vmem:[#allocation2 + $0x38] sm:$0xff]
          %v989 = vld [vmem:[#allocation2 + $0x40] sm:$0xff]
          %v990 = vld [vmem:[#allocation2 + $0x48] sm:$0xff]
          %v991 = vld [vmem:[#allocation2 + $0x50] sm:$0xff]
          %v992 = vld [vmem:[#allocation2 + $0x58] sm:$0xff]
          %v993 = vld [vmem:[#allocation2 + $0x60] sm:$0xff]
          %v994 = vld [vmem:[#allocation2 + $0x68] sm:$0xff]
          %v995 = vld [vmem:[#allocation2 + $0x70] sm:$0xff]
          %v996 = vld [vmem:[#allocation2 + $0x78] sm:$0xff]
          %v997 = vld [vmem:[%s2] sm:$0x1]
          %v999 = vlaneseq
          %v1000 = vshrl.u32 %v999, 7
          %v1001 = vsub.s32 0, %v1000
          %v1002 = vrot.slane %v997, %v1001
          %v1004 = vadd.f32 %v981, %v1002
          %v1005 = vadd.f32 %v982, %v1002
          %v1006 = vadd.f32 %v983, %v1002
          %v1007 = vadd.f32 %v984, %v1002
          %v1008 = vadd.f32 %v985, %v1002
          %v1009 = vadd.f32 %v986, %v1002
          %v1010 = vadd.f32 %v987, %v1002
          %v1011 = vadd.f32 %v988, %v1002
          %v1012 = vadd.f32 %v989, %v1002
          %v1013 = vadd.f32 %v990, %v1002
          %v1014 = vadd.f32 %v991, %v1002
          %v1015 = vadd.f32 %v992, %v1002
          %v1016 = vadd.f32 %v993, %v1002
          %v1017 = vadd.f32 %v994, %v1002
          %v1018 = vadd.f32 %v995, %v1002
          %v1019 = vadd.f32 %v996, %v1002
          %v1020 = vmax.f32 %v1004, 0.0
          %v1021 = vmax.f32 %v1005, 0.0
          %v1022 = vmax.f32 %v1006, 0.0
          %v1023 = vmax.f32 %v1007, 0.0
          %v1024 = vmax.f32 %v1008, 0.0
          %v1025 = vmax.f32 %v1009, 0.0
          %v1026 = vmax.f32 %v1010, 0.0
          %v1027 = vmax.f32 %v1011, 0.0
          %v1028 = vmax.f32 %v1012, 0.0
          %v1029 = vmax.f32 %v1013, 0.0
          %v1030 = vmax.f32 %v1014, 0.0
          %v1031 = vmax.f32 %v1015, 0.0
          %v1032 = vmax.f32 %v1016, 0.0
          %v1033 = vmax.f32 %v1017, 0.0
          %v1034 = vmax.f32 %v1018, 0.0
          %v1035 = vmax.f32 %v1019, 0.0
          %1036 = vst [vmem:[%s252] sm:$0xff] %v1020
          %1037 = vst [vmem:[%s252 + $0x8] sm:$0xff] %v1021
          %1038 = vst [vmem:[%s252 + $0x10] sm:$0xff] %v1022
          %1039 = vst [vmem:[%s252 + $0x18] sm:$0xff] %v1023
          %1040 = vst [vmem:[%s252 + $0x20] sm:$0xff] %v1024
          %1041 = vst [vmem:[%s252 + $0x28] sm:$0xff] %v1025
          %1042 = vst [vmem:[%s252 + $0x30] sm:$0xff] %v1026
          %1043 = vst [vmem:[%s252 + $0x38] sm:$0xff] %v1027
          %1044 = vst [vmem:[%s252 + $0x40] sm:$0xff] %v1028
          %1045 = vst [vmem:[%s252 + $0x48] sm:$0xff] %v1029
          %1046 = vst [vmem:[%s252 + $0x50] sm:$0xff] %v1030
          %1047 = vst [vmem:[%s252 + $0x58] sm:$0xff] %v1031
          %1048 = vst [vmem:[%s252 + $0x60] sm:$0xff] %v1032
          %1049 = vst [vmem:[%s252 + $0x68] sm:$0xff] %v1033
          %1050 = vst [vmem:[%s252 + $0x70] sm:$0xff] %v1034
          %1051 = vst [vmem:[%s252 + $0x78] sm:$0xff] %v1035
        $region48: #{tpu_custom_call.1} parent=31 // pred_fallthru
          _
        %s1052 = sand.u32 %s118, 1
        %s1053 = scalar_lea.sflag [#allocation5], %s1052
        %s1054 = sand.u32 %s118, 1
        %s1055 = smul.addr %s1054, 128
        %s1056 = scalar_lea.vmem [#allocation8], %s1055
        // Predicated region
        $region49: #{tpu_custom_call.1} parent=31 // pred_check
          %p1057 = pneg %p128
        $region50: #{tpu_custom_call.1} parent=31 // pred_check_branch
          %1059 = sbr.rel (%p1057) target = $region52
        $region51: #{tpu_custom_call.1} parent=31 // pred_region
          %s1060 = smul.u32 16, %s27
          %s1061 = ssub.s32 25, %s1060
          %p1062 = scmp.lt.s32.totalorder %s1061, 16
          %s1063 = scalar_select %p1062, %s1061, 16
          %s1064 = smul.u32 128, %s1063
          %s1066 = ssub.s32 2048, %s1064
          %1067 = vsyncadd %s1053, %s1066
          %p1068 = scmp.ne.s32.totalorder 0, %s1064
          %s1069 = smul.addr %s1060, 128
          %s1070 = scalar_lea.hbm %s3, %s1069
          %s1071 = smul.u32 8, %s1063
          %s1072 = sshll.u32 %s1056, 4
          %s1073 = int_to_ptr.vmem [resolvable:$true] %s1072
          %s1074 = sshll.u32 %s1071, 4
          %1078 = dma.vmem_to_hbm [thread:$0]  (%p1068), %s1073, %s1074, %s1070, %s1053, 128, 128, 8
        $region52: #{tpu_custom_call.1} parent=31 // pred_fallthru
          _
      $region32: #{tpu_custom_call.1} parent=5 // pred_fallthru
        _
      %p1079 = scmp.le.s32.totalorder 2, %s18
      // Predicated region
      $region53: #{tpu_custom_call.1} parent=5 // pred_check
        %p1080 = pneg %p1079
      $region54: #{tpu_custom_call.1} parent=5 // pred_check_branch
        %1082 = sbr.rel (%p1080) target = $region56
      $region55: #{tpu_custom_call.1} parent=5 // pred_region
        %s1083 = ssub.s32 %s18, 2
        // Predicated region
        $region57: #{tpu_custom_call.1} parent=55 // pred_check
          %p1084 = pneg %p134
        $region58: #{tpu_custom_call.1} parent=55 // pred_check_branch
          %1086 = sbr.rel (%p1084) target = $region60
        $region59: #{tpu_custom_call.1} parent=55 // pred_region
          %s1087 = sand.u32 %s119, 1
          %s1088 = scalar_lea.sflag [#allocation5], %s1087
          %s1089 = sand.u32 %s119, 1
          %s1090 = smul.addr %s1089, 128
          %s1091 = scalar_lea.vmem [#allocation8], %s1090
          %1092 = dma.done %s1088, 2048
        $region60: #{tpu_custom_call.1} parent=55 // pred_fallthru
          _
      $region56: #{tpu_custom_call.1} parent=5 // pred_fallthru
        _
    $region6: #{tpu_custom_call.1} parent=1 // loop_footer
      %s22 = sadd.s32 1, %s18
    $region7: #{tpu_custom_call.1} parent=1 // loop_footer_branch
      %17 = sbr.rel target = $region3
    $region8: #{tpu_custom_call.1} parent=1 // loop_exit
      _
    %1093 = vsyncpa [#allocation4], 1
    %s1094 = scalar_lea.sflag [#allocation4], 1
    %1095 = vsyncpa %s1094, 1
    %1096 = vsyncpa [#allocation7], 1
    %s1097 = scalar_lea.sflag [#allocation7], 1
    %1098 = vsyncpa %s1097, 1
    %1099 = vsyncpa [#allocation5], 1
    %s1100 = scalar_lea.sflag [#allocation5], 1
    %1101 = vsyncpa %s1100, 1

</llo_original>
